<compile_context>
chip_gen: v7x
topology: tpu7x:2x2x1
jax: 0.10.0
libtpu: 0.0.40
codegen_flags: <defaults>
</compile_context>

<pallas_src>
import jax
import jax.numpy as jnp
from jax.experimental import pallas as pl
from jax.experimental.pallas import tpu as pltpu

ALPHA = 0.01  # SoftClamp(alpha=0.01)


def softclamp(v):
    # TODO(synk): SoftClamp source not provided — leaky clamp to [0,1] with slope ALPHA outside.
    return (1.0 - ALPHA) * jnp.clip(v, 0.0, 1.0) + ALPHA * v


# ----------------------------------------------------------------------------------------------
# Fused greedy-selection Pallas kernel.
#   For one batch element the kernel holds all Tp candidates (templates & masks) in VMEM and
#   runs the full L-step greedy loop in-kernel:
#     base_t  = bg + m_t * (t_t - bg)                       (hoisted, loop-invariant)
#     err_t   = mean_HW ((x - top) - free * base_t)^2 + penalty_t
#     id      = argmin_t err_t        (first index wins ties, like torch.argmin)
#     top    += free * t_id * m_id ;  free *= (1 - m_id) ;  penalty_id += 1e8 (unless id == 0)
#   Only the per-step ids are written out (lane-dense f32 vector, cast to int32 outside).
# ----------------------------------------------------------------------------------------------
def _make_greedy_kernel(L, Tp, HW):
    inv_hw = 1.0 / float(HW)

    def kernel(x_ref, tmpl_ref, mask_ref, bg_ref, ids_ref):
        # bf16 storage halves DMA bytes; upcast once, compute in f32.
        x = x_ref[0].astype(jnp.float32)          # (1, HW)
        tmpl = tmpl_ref[0].astype(jnp.float32)    # (Tp, HW)
        mask = mask_ref[0].astype(jnp.float32)    # (Tp, HW)
        bg = bg_ref[0].astype(jnp.float32)        # (1, HW)

        # loop-invariant candidate terms (hoisted out of the greedy loop)
        base = bg + mask * (tmpl - bg)            # candidate composed over the background
        tm = tmpl * mask                          # template * mask

        idx_col = jax.lax.broadcasted_iota(jnp.int32, (Tp, 1), 0).astype(jnp.float32)
        lane_pos = jax.lax.broadcasted_iota(jnp.int32, (1, 128), 1)

        def body(l, carry):
            top, free, pen, ids_vec = carry
            # recon_t = top + free * base_t  ->  diff_t = (x - top) - free * base_t
            xt = x - top                                                  # (1, HW)
            diff = xt - free * base                                       # (Tp, HW)
            err = jnp.sum(diff * diff, axis=1, keepdims=True) * inv_hw    # (Tp, 1)
            err = err + pen                                               # block used candidates

            # argmin over candidates (first index achieving the min)
            min_err = jnp.min(err, axis=0, keepdims=True)                 # (1, 1)
            cand = jnp.where(err <= min_err, idx_col, float(Tp))          # (Tp, 1)
            cur_id = jnp.min(cand, axis=0, keepdims=True)                 # (1, 1) float index

            # one-hot gather of the selected template / mask (cross-sublane reduce)
            onehot = (idx_col == cur_id).astype(jnp.float32)              # (Tp, 1)
            sel_tm = jnp.sum(onehot * tm, axis=0, keepdims=True)          # (1, HW)
            sel_m = jnp.sum(onehot * mask, axis=0, keepdims=True)         # (1, HW)

            top = top + free * sel_tm
            free = free * (1.0 - sel_m)
            # empty candidate (index 0) may be re-selected; others get an effectively-inf penalty
            pen = pen + jnp.where(
                jnp.logical_and(idx_col == cur_id, cur_id > 0.5), 1e8, 0.0)
            ids_vec = jnp.where(lane_pos == l, cur_id, ids_vec)           # lane-dense id record
            return top, free, pen, ids_vec

        init = (jnp.zeros((1, HW), jnp.float32),   # top
                jnp.ones((1, HW), jnp.float32),    # free
                jnp.zeros((Tp, 1), jnp.float32),   # used-candidate penalty
                jnp.zeros((1, 128), jnp.float32))  # selected ids (lane-dense)
        _, _, _, ids_vec = jax.lax.fori_loop(0, L, body, init, unroll=True)
        ids_ref[0] = ids_vec

    return kernel


def greedy_select(x_f, tmpl_f, mask_f, bg_f, L):
    """Fused greedy selection. bf16 inputs, returns int32 (B, L) template ids."""
    B, Tp, HW = tmpl_f.shape
    assert L <= 128
    kernel = _make_greedy_kernel(L, Tp, HW)
    ids = pl.pallas_call(
        kernel,
        out_shape=jax.ShapeDtypeStruct((B, 1, 128), jnp.float32),
        grid=(B,),
        in_specs=[
            pl.BlockSpec((1, 1, HW), lambda b: (b, 0, 0)),    # x
            pl.BlockSpec((1, Tp, HW), lambda b: (b, 0, 0)),   # candidate templates
            pl.BlockSpec((1, Tp, HW), lambda b: (b, 0, 0)),   # candidate masks
            pl.BlockSpec((1, 1, HW), lambda b: (0, 0, 0)),    # background (shared)
        ],
        out_specs=pl.BlockSpec((1, 1, 128), lambda b: (b, 0, 0)),
        compiler_params=pltpu.CompilerParams(
            dimension_semantics=("parallel",),                # batch axis feeds both v7x TCs
            vmem_limit_bytes=32 * 1024 * 1024,
        ),
    )(x_f, tmpl_f, mask_f, bg_f)
    return ids[:, 0, :L].astype(jnp.int32)                    # (B, L)


# ----------------------------------------------------------------------------------------------
# PC-Cell (phase correlation) approximation in plain JAX
# TODO(synk): FFT has no Pallas primitive; the phase-correlation + peak-translation stays in JAX.
# ----------------------------------------------------------------------------------------------
def pc_cell_peaks(x, protos, L):
    # x: (B, C, H, W), protos: (P, C, H, W) -> peaks (B, P, L, 2) int32 (dy, dx)
    B, C, H, W = x.shape
    eps = 1e-6
    Xf = jnp.fft.fft2(x)                                    # (B, C, H, W)
    Pf = jnp.fft.fft2(protos)                               # (P, C, H, W)
    cross = Xf[:, None] * jnp.conj(Pf)[None]                # (B, P, C, H, W)
    cross = cross / (jnp.abs(cross) + eps)
    corr = jnp.real(jnp.fft.ifft2(cross)).sum(axis=2)       # (B, P, H, W)
    flat = corr.reshape(B, protos.shape[0], H * W)
    _, idx = jax.lax.top_k(flat, L)                         # (B, P, L)
    peaks = jnp.stack([idx // W, idx % W], axis=-1)
    return peaks


def translate_by_peaks(protos, peaks):
    # protos: (P, C, H, W), peaks: (B, P, L, 2) -> (B, L, P, C, H, W) circular translations
    P, C, H, W = protos.shape

    def shift_one(proto, dy, dx):
        rows = (jnp.arange(H) - dy) % H
        cols = (jnp.arange(W) - dx) % W
        return proto[:, rows][:, :, cols]

    def per_bl(dy_p, dx_p):                                  # (P,), (P,)
        return jax.vmap(shift_one)(protos, dy_p, dx_p)       # (P, C, H, W)

    dy = jnp.transpose(peaks[..., 0], (0, 2, 1))             # (B, L, P)
    dx = jnp.transpose(peaks[..., 1], (0, 2, 1))
    return jax.vmap(jax.vmap(per_bl))(dy, dx)                # (B, L, P, C, H, W)


# ----------------------------------------------------------------------------------------------
# DecompModel forward
# ----------------------------------------------------------------------------------------------
class DecompModelPallas:
    def __init__(self, num_protos, num_objects, proto_size=16, background_size=16, channels=1):
        assert channels == 1, "templates are reshaped to a single channel, as in the reference"
        self.num_protos = num_protos
        self.num_objects = num_objects
        self.max_objects = num_objects
        self.proto_size = (proto_size, proto_size)
        self.channels = channels

        # deterministic 'blobs' prototype init (protolib.init_prototypes(mode='blobs'))
        ph, pw = self.proto_size
        yy, xx = jnp.meshgrid(jnp.arange(ph, dtype=jnp.float32),
                              jnp.arange(pw, dtype=jnp.float32), indexing="ij")
        cy, cx = (ph - 1) / 2.0, (pw - 1) / 2.0
        blobs = []
        for p in range(num_protos):
            sigma = 1.5 + 0.75 * p
            blob = jnp.exp(-((yy - cy) ** 2 + (xx - cx) ** 2) / (2.0 * sigma ** 2))
            blobs.append(jnp.broadcast_to(blob, (channels, ph, pw)))
        self.prototypes = jnp.stack(blobs, axis=0).astype(jnp.float32)      # (P, C, ph, pw)
        self.masks = 0.5 * jnp.ones((num_protos, 1, ph, pw), jnp.float32)   # (P, 1, ph, pw)
        self.background = jnp.zeros((1, channels, background_size, background_size),
                                    jnp.float32)                            # (1, C, Hb, Wb)

    @staticmethod
    def _pad_prototypes(img, protos):
        ih, iw = img.shape[-2:]
        ph, pw = protos.shape[-2:]
        if (ih, iw) == (ph, pw):
            return protos
        pr, pc = (ih - ph) / 2.0, (iw - pw) / 2.0
        pad = ((0, 0), (0, 0),
               (int(-(-pr // 1)), int(pr // 1)),
               (int(-(-pc // 1)), int(pc // 1)))
        return jnp.pad(protos, pad)

    def forward(self, x):
        B, C, H, W = x.shape
        assert C == 1
        L, P = self.max_objects, self.num_protos
        HW = H * W

        # 1. setup prototypes & masks (eval-mode semantics, no noise). Plain JAX: the tensors
        #    are a few KiB, so the old pallas_call was pure launch overhead.
        pmasks = softclamp(self.masks)                       # (P, 1, ph, pw)
        protos = softclamp(self.prototypes * self.masks)     # (P, C, ph, pw)

        # 2. pad to image size
        protos = self._pad_prototypes(x, protos)             # (P, C, H, W)
        pmasks = self._pad_prototypes(x, pmasks)             # (P, 1, H, W)

        # 3. PC-Cell: candidate positions + translated templates/masks  (plain JAX, see TODO)
        peaks = pc_cell_peaks(x, protos, L)
        templates = translate_by_peaks(protos, peaks).reshape(B, L * P, HW)   # C==1 folded away
        tmasks = translate_by_peaks(pmasks, peaks).reshape(B, L * P, HW)

        # 4. candidate set (use_empty=False branch: empty template = 5, empty mask = 1)
        empty_t = jnp.full((B, 1, HW), 5.0, jnp.float32)
        empty_m = jnp.ones((B, 1, HW), jnp.float32)
        tmpl_f = jnp.concatenate([empty_t, templates], axis=1)   # (B, Tp, HW) f32
        mask_f = jnp.concatenate([empty_m, tmasks], axis=1)      # (B, Tp, HW) f32
        x_f = x.reshape(B, 1, HW)
        bg_f = self.background.reshape(1, 1, HW)

        # 5. fused greedy selection: ONE Pallas kernel, candidates streamed once as bf16
        template_ids = greedy_select(
            x_f.astype(jnp.bfloat16), tmpl_f.astype(jnp.bfloat16),
            mask_f.astype(jnp.bfloat16), bg_f.astype(jnp.bfloat16), L)    # (B, L) int32

        # 6. gather the selected f32 objects and compose the reconstruction.
        #    (compose_templates kernel dropped: this is L cheap fused elementwise FMAs.)
        objects_f = jnp.take_along_axis(tmpl_f, template_ids[:, :, None], axis=1)   # (B, L, HW)
        objmasks_f = jnp.take_along_axis(mask_f, template_ids[:, :, None], axis=1)  # (B, L, HW)

        recon = jnp.broadcast_to(bg_f[:, 0, :], (B, HW))
        for i in range(L):             # last selected drawn first; object 0 ends up on top
            o = objects_f[:, L - 1 - i]
            m = objmasks_f[:, L - 1 - i]
            recon = o * m + recon * (1.0 - m)

        reconstruction = recon.reshape(B, C, H, W)
        objects = objects_f.reshape(B, L, C, H, W)
        return reconstruction, (objects, template_ids, protos)


# ----------------------------------------------------------------------------------------------
if __name__ == "__main__":
    key = jax.random.PRNGKey(0)
    B, C, H, W = 2, 1, 16, 16
    num_protos, num_objects = 3, 2

    x = jax.random.uniform(key, (B, C, H, W), dtype=jnp.float32)

    model = DecompModelPallas(num_protos=num_protos, num_objects=num_objects,
                              proto_size=16, background_size=16, channels=C)
    reconstruction, (objects, object_ids, protos) = model.forward(x)

    jax.block_until_ready(reconstruction)
    jax.block_until_ready(objects)
    jax.block_until_ready(object_ids)

    assert reconstruction.shape == (B, C, H, W)
    assert objects.shape == (B, num_objects, C, H, W)
    assert object_ids.shape == (B, num_objects)
    print("KERNEL_OK")
</pallas_src>

<mosaic_0001>
module attributes {stable_mosaic.version = 11 : i64} {
  func.func @kernel(%arg0: i32, %arg1: memref<1x1x256xbf16, #tpu.memory_space<vmem>>, %arg2: memref<1x7x256xbf16, #tpu.memory_space<vmem>>, %arg3: memref<1x7x256xbf16, #tpu.memory_space<vmem>>, %arg4: memref<1x1x256xbf16, #tpu.memory_space<vmem>>, %arg5: memref<1x1x128xf32, #tpu.memory_space<vmem>>) attributes {dimension_semantics = [#tpu.dimension_semantics<parallel>], iteration_bounds = array<i64: 2>, scalar_prefetch = 0 : i64, scratch_operands = 0 : i64, tpu.core_type = #tpu.core_type<tc>, window_params = [{transform_indices = @transform_0, window_bounds = array<i64: 1, 1, 256>}, {transform_indices = @transform_1, window_bounds = array<i64: 1, 7, 256>}, {transform_indices = @transform_2, window_bounds = array<i64: 1, 7, 256>}, {pipeline_mode = #tpu.pipeline_mode<synchronous>, transform_indices = @transform_3, window_bounds = array<i64: 1, 1, 256>}, {transform_indices = @transform_4, window_bounds = array<i64: 1, 1, 128>}]} {
    %c0 = arith.constant 0 : index
    %c0_0 = arith.constant 0 : index
    %c0_1 = arith.constant 0 : index
    %0 = vector.load %arg1[%c0, %c0_0, %c0_1] : memref<1x1x256xbf16, #tpu.memory_space<vmem>>, vector<1x1x256xbf16>
    %1 = vector.shape_cast %0 : vector<1x1x256xbf16> to vector<1x256xbf16>
    %2 = arith.extf %1 : vector<1x256xbf16> to vector<1x256xf32>
    %c0_2 = arith.constant 0 : index
    %c0_3 = arith.constant 0 : index
    %c0_4 = arith.constant 0 : index
    %3 = vector.load %arg2[%c0_2, %c0_3, %c0_4] : memref<1x7x256xbf16, #tpu.memory_space<vmem>>, vector<1x7x256xbf16>
    %4 = vector.shape_cast %3 : vector<1x7x256xbf16> to vector<7x256xbf16>
    %5 = arith.extf %4 : vector<7x256xbf16> to vector<7x256xf32>
    %c0_5 = arith.constant 0 : index
    %c0_6 = arith.constant 0 : index
    %c0_7 = arith.constant 0 : index
    %6 = vector.load %arg3[%c0_5, %c0_6, %c0_7] : memref<1x7x256xbf16, #tpu.memory_space<vmem>>, vector<1x7x256xbf16>
    %7 = vector.shape_cast %6 : vector<1x7x256xbf16> to vector<7x256xbf16>
    %8 = arith.extf %7 : vector<7x256xbf16> to vector<7x256xf32>
    %c0_8 = arith.constant 0 : index
    %c0_9 = arith.constant 0 : index
    %c0_10 = arith.constant 0 : index
    %9 = vector.load %arg4[%c0_8, %c0_9, %c0_10] : memref<1x1x256xbf16, #tpu.memory_space<vmem>>, vector<1x1x256xbf16>
    %10 = vector.shape_cast %9 : vector<1x1x256xbf16> to vector<1x256xbf16>
    %11 = arith.extf %10 : vector<1x256xbf16> to vector<1x256xf32>
    %12 = vector.broadcast %11 : vector<1x256xf32> to vector<7x256xf32>
    %13 = arith.subf %5, %12 : vector<7x256xf32>
    %14 = arith.mulf %8, %13 : vector<7x256xf32>
    %15 = vector.broadcast %11 : vector<1x256xf32> to vector<7x256xf32>
    %16 = arith.addf %15, %14 : vector<7x256xf32>
    %17 = arith.mulf %5, %8 : vector<7x256xf32>
    %18 = tpu.iota {dimensions = array<i32: 0>} : vector<7x1xi32>
    %19 = arith.sitofp %18 : vector<7x1xi32> to vector<7x1xf32>
    %20 = tpu.iota {dimensions = array<i32: 1>} : vector<1x128xi32>
    %cst = arith.constant 0.000000e+00 : f32
    %21 = vector.broadcast %cst : f32 to vector<1x256xf32>
    %cst_11 = arith.constant 1.000000e+00 : f32
    %22 = vector.broadcast %cst_11 : f32 to vector<1x256xf32>
    %cst_12 = arith.constant 0.000000e+00 : f32
    %23 = vector.broadcast %cst_12 : f32 to vector<7x1xf32>
    %cst_13 = arith.constant 0.000000e+00 : f32
    %24 = vector.broadcast %cst_13 : f32 to vector<1x128xf32>
    %c0_i32 = arith.constant 0 : i32
    %25 = arith.subf %2, %21 : vector<1x256xf32>
    %26 = vector.broadcast %22 : vector<1x256xf32> to vector<7x256xf32>
    %27 = arith.mulf %26, %16 : vector<7x256xf32>
    %28 = vector.broadcast %25 : vector<1x256xf32> to vector<7x256xf32>
    %29 = arith.subf %28, %27 : vector<7x256xf32>
    %30 = arith.mulf %29, %29 : vector<7x256xf32>
    %cst_14 = arith.constant dense<0.000000e+00> : vector<7xf32>
    %31 = vector.multi_reduction <add>, %30, %cst_14 [1] : vector<7x256xf32> to vector<7xf32>
    %32 = vector.shape_cast %31 : vector<7xf32> to vector<7x1xf32>
    %cst_15 = arith.constant 3.906250e-03 : f32
    %33 = vector.broadcast %cst_15 : f32 to vector<7x1xf32>
    %34 = arith.mulf %32, %33 : vector<7x1xf32>
    %35 = arith.addf %34, %23 : vector<7x1xf32>
    %cst_16 = arith.constant dense<0x7F800000> : vector<1xf32>
    %36 = vector.multi_reduction <minimumf>, %35, %cst_16 [0] : vector<7x1xf32> to vector<1xf32>
    %37 = vector.shape_cast %36 : vector<1xf32> to vector<1x1xf32>
    %38 = vector.broadcast %37 : vector<1x1xf32> to vector<7x1xf32>
    %39 = arith.cmpf ole, %35, %38 : vector<7x1xf32>
    %cst_17 = arith.constant 7.000000e+00 : f32
    %40 = vector.broadcast %cst_17 : f32 to vector<7x1xf32>
    %41 = arith.select %39, %19, %40 : vector<7x1xi1>, vector<7x1xf32>
    %cst_18 = arith.constant dense<0x7F800000> : vector<1xf32>
    %42 = vector.multi_reduction <minimumf>, %41, %cst_18 [0] : vector<7x1xf32> to vector<1xf32>
    %43 = vector.shape_cast %42 : vector<1xf32> to vector<1x1xf32>
    %44 = vector.broadcast %43 : vector<1x1xf32> to vector<7x1xf32>
    %45 = arith.cmpf oeq, %19, %44 : vector<7x1xf32>
    %46 = arith.extui %45 : vector<7x1xi1> to vector<7x1xi32>
    %47 = arith.sitofp %46 : vector<7x1xi32> to vector<7x1xf32>
    %48 = vector.broadcast %47 : vector<7x1xf32> to vector<7x256xf32>
    %49 = arith.mulf %48, %17 : vector<7x256xf32>
    %cst_19 = arith.constant dense<0.000000e+00> : vector<256xf32>
    %50 = vector.multi_reduction <add>, %49, %cst_19 [0] : vector<7x256xf32> to vector<256xf32>
    %51 = vector.shape_cast %50 : vector<256xf32> to vector<1x256xf32>
    %52 = vector.broadcast %47 : vector<7x1xf32> to vector<7x256xf32>
    %53 = arith.mulf %52, %8 : vector<7x256xf32>
    %cst_20 = arith.constant dense<0.000000e+00> : vector<256xf32>
    %54 = vector.multi_reduction <add>, %53, %cst_20 [0] : vector<7x256xf32> to vector<256xf32>
    %55 = vector.shape_cast %54 : vector<256xf32> to vector<1x256xf32>
    %56 = arith.mulf %22, %51 : vector<1x256xf32>
    %57 = arith.addf %21, %56 : vector<1x256xf32>
    %cst_21 = arith.constant 1.000000e+00 : f32
    %58 = vector.broadcast %cst_21 : f32 to vector<1x256xf32>
    %59 = arith.subf %58, %55 : vector<1x256xf32>
    %60 = arith.mulf %22, %59 : vector<1x256xf32>
    %61 = vector.broadcast %43 : vector<1x1xf32> to vector<7x1xf32>
    %62 = arith.cmpf oeq, %19, %61 : vector<7x1xf32>
    %cst_22 = arith.constant 5.000000e-01 : f32
    %63 = vector.broadcast %cst_22 : f32 to vector<1x1xf32>
    %64 = arith.cmpf ogt, %43, %63 : vector<1x1xf32>
    %65 = vector.broadcast %64 : vector<1x1xi1> to vector<7x1xi1>
    %66 = arith.andi %62, %65 : vector<7x1xi1>
    %cst_23 = arith.constant 1.000000e+08 : f32
    %cst_24 = arith.constant 0.000000e+00 : f32
    %67 = vector.broadcast %cst_23 : f32 to vector<7x1xf32>
    %68 = vector.broadcast %cst_24 : f32 to vector<7x1xf32>
    %69 = arith.select %66, %67, %68 : vector<7x1xi1>, vector<7x1xf32>
    %70 = arith.addf %23, %69 : vector<7x1xf32>
    %71 = vector.broadcast %c0_i32 : i32 to vector<1x128xi32>
    %72 = arith.cmpi eq, %20, %71 : vector<1x128xi32>
    %73 = vector.shape_cast %43 : vector<1x1xf32> to vector<1x1xf32>
    %74 = vector.broadcast %73 : vector<1x1xf32> to vector<1x128xf32>
    %75 = arith.select %72, %74, %24 : vector<1x128xi1>, vector<1x128xf32>
    %c1_i32 = arith.constant 1 : i32
    %76 = arith.subf %2, %57 : vector<1x256xf32>
    %77 = vector.broadcast %60 : vector<1x256xf32> to vector<7x256xf32>
    %78 = arith.mulf %77, %16 : vector<7x256xf32>
    %79 = vector.broadcast %76 : vector<1x256xf32> to vector<7x256xf32>
    %80 = arith.subf %79, %78 : vector<7x256xf32>
    %81 = arith.mulf %80, %80 : vector<7x256xf32>
    %cst_25 = arith.constant dense<0.000000e+00> : vector<7xf32>
    %82 = vector.multi_reduction <add>, %81, %cst_25 [1] : vector<7x256xf32> to vector<7xf32>
    %83 = vector.shape_cast %82 : vector<7xf32> to vector<7x1xf32>
    %cst_26 = arith.constant 3.906250e-03 : f32
    %84 = vector.broadcast %cst_26 : f32 to vector<7x1xf32>
    %85 = arith.mulf %83, %84 : vector<7x1xf32>
    %86 = arith.addf %85, %70 : vector<7x1xf32>
    %cst_27 = arith.constant dense<0x7F800000> : vector<1xf32>
    %87 = vector.multi_reduction <minimumf>, %86, %cst_27 [0] : vector<7x1xf32> to vector<1xf32>
    %88 = vector.shape_cast %87 : vector<1xf32> to vector<1x1xf32>
    %89 = vector.broadcast %88 : vector<1x1xf32> to vector<7x1xf32>
    %90 = arith.cmpf ole, %86, %89 : vector<7x1xf32>
    %cst_28 = arith.constant 7.000000e+00 : f32
    %91 = vector.broadcast %cst_28 : f32 to vector<7x1xf32>
    %92 = arith.select %90, %19, %91 : vector<7x1xi1>, vector<7x1xf32>
    %cst_29 = arith.constant dense<0x7F800000> : vector<1xf32>
    %93 = vector.multi_reduction <minimumf>, %92, %cst_29 [0] : vector<7x1xf32> to vector<1xf32>
    %94 = vector.shape_cast %93 : vector<1xf32> to vector<1x1xf32>
    %95 = vector.broadcast %94 : vector<1x1xf32> to vector<7x1xf32>
    %96 = arith.cmpf oeq, %19, %95 : vector<7x1xf32>
    %97 = arith.extui %96 : vector<7x1xi1> to vector<7x1xi32>
    %98 = arith.sitofp %97 : vector<7x1xi32> to vector<7x1xf32>
    %99 = vector.broadcast %98 : vector<7x1xf32> to vector<7x256xf32>
    %100 = arith.mulf %99, %17 : vector<7x256xf32>
    %cst_30 = arith.constant dense<0.000000e+00> : vector<256xf32>
    %101 = vector.multi_reduction <add>, %100, %cst_30 [0] : vector<7x256xf32> to vector<256xf32>
    %102 = vector.shape_cast %101 : vector<256xf32> to vector<1x256xf32>
    %103 = vector.broadcast %98 : vector<7x1xf32> to vector<7x256xf32>
    %104 = arith.mulf %103, %8 : vector<7x256xf32>
    %cst_31 = arith.constant dense<0.000000e+00> : vector<256xf32>
    %105 = vector.multi_reduction <add>, %104, %cst_31 [0] : vector<7x256xf32> to vector<256xf32>
    %106 = vector.shape_cast %105 : vector<256xf32> to vector<1x256xf32>
    %107 = arith.mulf %60, %102 : vector<1x256xf32>
    %108 = arith.addf %57, %107 : vector<1x256xf32>
    %cst_32 = arith.constant 1.000000e+00 : f32
    %109 = vector.broadcast %cst_32 : f32 to vector<1x256xf32>
    %110 = arith.subf %109, %106 : vector<1x256xf32>
    %111 = arith.mulf %60, %110 : vector<1x256xf32>
    %112 = vector.broadcast %94 : vector<1x1xf32> to vector<7x1xf32>
    %113 = arith.cmpf oeq, %19, %112 : vector<7x1xf32>
    %cst_33 = arith.constant 5.000000e-01 : f32
    %114 = vector.broadcast %cst_33 : f32 to vector<1x1xf32>
    %115 = arith.cmpf ogt, %94, %114 : vector<1x1xf32>
    %116 = vector.broadcast %115 : vector<1x1xi1> to vector<7x1xi1>
    %117 = arith.andi %113, %116 : vector<7x1xi1>
    %cst_34 = arith.constant 1.000000e+08 : f32
    %cst_35 = arith.constant 0.000000e+00 : f32
    %118 = vector.broadcast %cst_34 : f32 to vector<7x1xf32>
    %119 = vector.broadcast %cst_35 : f32 to vector<7x1xf32>
    %120 = arith.select %117, %118, %119 : vector<7x1xi1>, vector<7x1xf32>
    %121 = arith.addf %70, %120 : vector<7x1xf32>
    %122 = vector.broadcast %c1_i32 : i32 to vector<1x128xi32>
    %123 = arith.cmpi eq, %20, %122 : vector<1x128xi32>
    %124 = vector.shape_cast %94 : vector<1x1xf32> to vector<1x1xf32>
    %125 = vector.broadcast %124 : vector<1x1xf32> to vector<1x128xf32>
    %126 = arith.select %123, %125, %75 : vector<1x128xi1>, vector<1x128xf32>
    %c2_i32 = arith.constant 2 : i32
    %c0_36 = arith.constant 0 : index
    %c0_37 = arith.constant 0 : index
    %c0_38 = arith.constant 0 : index
    %127 = vector.load %arg5[%c0_36, %c0_37, %c0_38] : memref<1x1x128xf32, #tpu.memory_space<vmem>>, vector<1x1x128xf32>
    %128 = vector.shape_cast %127 : vector<1x1x128xf32> to vector<1x128xf32>
    %129 = vector.shape_cast %126 : vector<1x128xf32> to vector<1x1x128xf32>
    tpu.vector_store %arg5[%c0_36, %c0_37, %c0_38], %129 {strides = array<i32>} : memref<1x1x128xf32, #tpu.memory_space<vmem>>, vector<1x1x128xf32>,
    return
  }
  func.func @transform_0(%arg0: i32) -> (i32, i32, i32) {
    %c0_i32 = arith.constant 0 : i32
    %c0_i32_0 = arith.constant 0 : i32
    %c0_i32_1 = arith.constant 0 : i32
    return %arg0, %c0_i32, %c0_i32_0 : i32, i32, i32
  }
  func.func @transform_1(%arg0: i32) -> (i32, i32, i32) {
    %c0_i32 = arith.constant 0 : i32
    %c0_i32_0 = arith.constant 0 : i32
    %c0_i32_1 = arith.constant 0 : i32
    return %arg0, %c0_i32, %c0_i32_0 : i32, i32, i32
  }
  func.func @transform_2(%arg0: i32) -> (i32, i32, i32) {
    %c0_i32 = arith.constant 0 : i32
    %c0_i32_0 = arith.constant 0 : i32
    %c0_i32_1 = arith.constant 0 : i32
    return %arg0, %c0_i32, %c0_i32_0 : i32, i32, i32
  }
  func.func @transform_3(%arg0: i32) -> (i32, i32, i32) {
    %c0_i32 = arith.constant 0 : i32
    %c0_i32_0 = arith.constant 0 : i32
    %c0_i32_1 = arith.constant 0 : i32
    %c0_i32_2 = arith.constant 0 : i32
    return %c0_i32, %c0_i32_0, %c0_i32_1 : i32, i32, i32
  }
  func.func @transform_4(%arg0: i32) -> (i32, i32, i32) {
    %c0_i32 = arith.constant 0 : i32
    %c0_i32_0 = arith.constant 0 : i32
    %c0_i32_1 = arith.constant 0 : i32
    return %arg0, %c0_i32, %c0_i32_0 : i32, i32, i32
  }
}

</mosaic_0001>

<llo_original>
// kernel: tpu_custom_call.1
$region0: #{tpu_custom_call.1}
  #allocation0 [shape = 'u32[]', space=smem, size = 0x4, offset = 0x4, fixed_abs, tag = 'smem constant byte address 0x4 - core index']
  #allocation1 [shape = 'u32[144,128]{1,0:T(1,128)}', space=vmem, size = 0x12000, scoped, tag = 'internal scratch']
  %s0 = inlined_call_operand.vmem [shape: bf16[2,1,256], index: 0, kind: input, shape index: {}]
  %s1 = inlined_call_operand.vmem [shape: bf16[2,7,256], index: 1, kind: input, shape index: {}]
  %s2 = inlined_call_operand.vmem [shape: bf16[2,7,256], index: 2, kind: input, shape index: {}]
  %s3 = inlined_call_operand.vmem [shape: bf16[1,1,256], index: 3, kind: input, shape index: {}]
  %s4 = inlined_call_operand.hbm [shape: f32[2,1,128], index: 4, kind: output, shape index: {}]
  %s5 = sld [smem:[#allocation0]]
  $region49: #{tpu_custom_call.1} parent=0
    _
  %s7 = ssub.s32 1, %s5
  %s8 = scalar_select 0, %s7, %s5
  $region1: #{tpu_custom_call.1} parent=0
    #allocation2 [shape = 'u8[1024]{0}', space=vmem, size = 0x400, scoped, tag = 'output window, operand 0']
    #allocation3 [shape = 's32[2]{0}', space=sflag, size = 0x8, scoped, tag = 'scoped memory for tpu_custom_call.1']
    %9 = vsyncpa [#allocation3], 0
    %s10 = scalar_lea.sflag [#allocation3], 1
    %11 = vsyncpa %s10, 0
    loop: start=0, step=1, limit=4
    $region2: #{tpu_custom_call.1} parent=1 // loop_pre_header
      _
    $region3: #{tpu_custom_call.1} parent=1 // loop_header
      %s13 = sphi 0, %s17
      %p14 = scmp.ge.s32.totalorder %s13, 4
      %s23 = sphi 0, %s25
      %s26 = sphi 0, %s23
      %s27 = sphi 0, %s26
      %s43 = sphi 0, %s27
      %s49 = sphi 0, %s51
      %s52 = sphi 0, %s49
      %s53 = sphi 0, %s52
      %s69 = sphi 0, %s53
      %s75 = sphi 0, %s77
      %s78 = sphi 0, %s75
      %s79 = sphi 0, %s78
      %s95 = sphi 0, %s79
      %s99 = sphi 0, %s99
      %s101 = sphi 0, %s99
      %s102 = sphi 0, %s101
      %s116 = sphi 0, %s102
      %s122 = sphi 0, %s124
      %s125 = sphi 0, %s122
      %s126 = sphi 0, %s125
      %s142 = sphi 0, %s126
    $region4: #{tpu_custom_call.1} parent=1 // loop_header_branch
      %16 = sbr.rel (%p14) target = $region8
    $region5: #{tpu_custom_call.1} parent=1 // loop_body
      %s18 = ssub.s32 %s13, 1
      %s19 = ssub.s32 %s13, 2
      %s20 = sadd.s32 %s13, 1
      %s21 = ssub.s32 %s13, %s20
      %p22 = scmp.eq.s32.totalorder %s21, 0
      %s24 = sadd.s32 %s23, 1
      %s25 = scalar_select %p22, %s23, %s24
      %p28 = pneg %p22
      %p29 = scmp.eq.s32.totalorder %s13, 1
      %p30 = por %p28, %p29
      %p31 = scmp.ne.s32.totalorder %s23, %s26
      %p32 = scmp.eq.s32.totalorder %s13, 0
      %p33 = por %p31, %p32
      %p34 = scmp.ne.s32.totalorder %s23, %s26
      %p35 = scmp.eq.s32.totalorder %s18, 1
      %p36 = por %p34, %p35
      %p37 = scmp.ne.s32.totalorder %s26, %s27
      %p38 = scmp.eq.s32.totalorder %s18, 0
      %p39 = por %p37, %p38
      %p40 = scmp.ne.s32.totalorder %s26, %s27
      %p41 = scmp.eq.s32.totalorder %s19, 1
      %p42 = por %p40, %p41
      %p44 = scmp.ne.s32.totalorder %s27, %s43
      %p45 = scmp.eq.s32.totalorder %s19, 0
      %p46 = por %p44, %p45
      %s47 = ssub.s32 %s13, %s20
      %p48 = scmp.eq.s32.totalorder %s47, 0
      %s50 = sadd.s32 %s49, 1
      %s51 = scalar_select %p48, %s49, %s50
      %p54 = pneg %p48
      %p55 = scmp.eq.s32.totalorder %s13, 1
      %p56 = por %p54, %p55
      %p57 = scmp.ne.s32.totalorder %s49, %s52
      %p58 = scmp.eq.s32.totalorder %s13, 0
      %p59 = por %p57, %p58
      %p60 = scmp.ne.s32.totalorder %s49, %s52
      %p61 = scmp.eq.s32.totalorder %s18, 1
      %p62 = por %p60, %p61
      %p63 = scmp.ne.s32.totalorder %s52, %s53
      %p64 = scmp.eq.s32.totalorder %s18, 0
      %p65 = por %p63, %p64
      %p66 = scmp.ne.s32.totalorder %s52, %s53
      %p67 = scmp.eq.s32.totalorder %s19, 1
      %p68 = por %p66, %p67
      %p70 = scmp.ne.s32.totalorder %s53, %s69
      %p71 = scmp.eq.s32.totalorder %s19, 0
      %p72 = por %p70, %p71
      %s73 = ssub.s32 %s13, %s20
      %p74 = scmp.eq.s32.totalorder %s73, 0
      %s76 = sadd.s32 %s75, 1
      %s77 = scalar_select %p74, %s75, %s76
      %p80 = pneg %p74
      %p81 = scmp.eq.s32.totalorder %s13, 1
      %p82 = por %p80, %p81
      %p83 = scmp.ne.s32.totalorder %s75, %s78
      %p84 = scmp.eq.s32.totalorder %s13, 0
      %p85 = por %p83, %p84
      %p86 = scmp.ne.s32.totalorder %s75, %s78
      %p87 = scmp.eq.s32.totalorder %s18, 1
      %p88 = por %p86, %p87
      %p89 = scmp.ne.s32.totalorder %s78, %s79
      %p90 = scmp.eq.s32.totalorder %s18, 0
      %p91 = por %p89, %p90
      %p92 = scmp.ne.s32.totalorder %s78, %s79
      %p93 = scmp.eq.s32.totalorder %s19, 1
      %p94 = por %p92, %p93
      %p96 = scmp.ne.s32.totalorder %s79, %s95
      %p97 = scmp.eq.s32.totalorder %s19, 0
      %p98 = por %p96, %p97
      %s100 = sadd.s32 %s99, 1
      %p103 = scmp.eq.s32.totalorder %s13, 1
      %p104 = scmp.ne.s32.totalorder %s99, %s101
      %p105 = scmp.eq.s32.totalorder %s13, 0
      %p106 = por %p104, %p105
      %p107 = scmp.ne.s32.totalorder %s99, %s101
      %p108 = scmp.eq.s32.totalorder %s18, 1
      %p109 = por %p107, %p108
      %p110 = scmp.ne.s32.totalorder %s101, %s102
      %p111 = scmp.eq.s32.totalorder %s18, 0
      %p112 = por %p110, %p111
      %p113 = scmp.ne.s32.totalorder %s101, %s102
      %p114 = scmp.eq.s32.totalorder %s19, 1
      %p115 = por %p113, %p114
      %p117 = scmp.ne.s32.totalorder %s102, %s116
      %p118 = scmp.eq.s32.totalorder %s19, 0
      %p119 = por %p117, %p118
      %s120 = ssub.s32 %s13, %s20
      %p121 = scmp.eq.s32.totalorder %s120, 0
      %s123 = sadd.s32 %s122, 1
      %s124 = scalar_select %p121, %s122, %s123
      %p127 = pneg %p121
      %p128 = scmp.eq.s32.totalorder %s13, 1
      %p129 = por %p127, %p128
      %p130 = scmp.ne.s32.totalorder %s122, %s125
      %p131 = scmp.eq.s32.totalorder %s13, 0
      %p132 = por %p130, %p131
      %p133 = scmp.ne.s32.totalorder %s122, %s125
      %p134 = scmp.eq.s32.totalorder %s18, 1
      %p135 = por %p133, %p134
      %p136 = scmp.ne.s32.totalorder %s125, %s126
      %p137 = scmp.eq.s32.totalorder %s18, 0
      %p138 = por %p136, %p137
      %p139 = scmp.ne.s32.totalorder %s125, %s126
      %p140 = scmp.eq.s32.totalorder %s19, 1
      %p141 = por %p139, %p140
      %p143 = scmp.ne.s32.totalorder %s126, %s142
      %p144 = scmp.eq.s32.totalorder %s19, 0
      %p145 = por %p143, %p144
      %p146 = scmp.le.s32.totalorder 1, %s13
      %p147 = scmp.lt.s32.totalorder %s13, 3
      %p148 = pnand %p146, %p147
      %p149 = pneg %p148
      // Predicated region
      $region9: #{tpu_custom_call.1} parent=5 // pred_check
        _
      $region10: #{tpu_custom_call.1} parent=5 // pred_check_branch
        %151 = sbr.rel (%p148) target = $region12
      $region11: #{tpu_custom_call.1} parent=5 // pred_region
        %s152 = ssub.s32 %s13, 1
        // Predicated region
        $region13: #{tpu_custom_call.1} parent=11 // pred_check
          %p153 = pneg %p112
        $region14: #{tpu_custom_call.1} parent=11 // pred_check_branch
          %155 = sbr.rel (%p153) target = $region16
        $region15: #{tpu_custom_call.1} parent=11 // pred_region
          _
        $region16: #{tpu_custom_call.1} parent=11 // pred_fallthru
          _
      $region12: #{tpu_custom_call.1} parent=5 // pred_fallthru
        _
      %p156 = scmp.lt.s32.totalorder %s13, 2
      // Predicated region
      $region17: #{tpu_custom_call.1} parent=5 // pred_check
        %p157 = pneg %p156
      $region18: #{tpu_custom_call.1} parent=5 // pred_check_branch
        %159 = sbr.rel (%p157) target = $region20
      $region19: #{tpu_custom_call.1} parent=5 // pred_region
        // Predicated region
        $region21: #{tpu_custom_call.1} parent=19 // pred_check
          %p160 = pneg %p33
        $region22: #{tpu_custom_call.1} parent=19 // pred_check_branch
          %162 = sbr.rel (%p160) target = $region24
        $region23: #{tpu_custom_call.1} parent=19 // pred_region
          %p163 = scmp.lt.s32.totalorder %s13, 1
          %s164 = scalar_select %p163, %s13, 1
          %s165 = smul.addr %s164, 2
          %s166 = scalar_lea.vmem %s0, %s165
        $region24: #{tpu_custom_call.1} parent=19 // pred_fallthru
          _
        // Predicated region
        $region25: #{tpu_custom_call.1} parent=19 // pred_check
          %p167 = pneg %p59
        $region26: #{tpu_custom_call.1} parent=19 // pred_check_branch
          %169 = sbr.rel (%p167) target = $region28
        $region27: #{tpu_custom_call.1} parent=19 // pred_region
          %p170 = scmp.lt.s32.totalorder %s13, 1
          %s171 = scalar_select %p170, %s13, 1
          %s172 = smul.addr %s171, 2
          %s173 = smul.addr %s172, 4
          %s174 = scalar_lea.vmem %s1, %s173
        $region28: #{tpu_custom_call.1} parent=19 // pred_fallthru
          _
        // Predicated region
        $region29: #{tpu_custom_call.1} parent=19 // pred_check
          %p175 = pneg %p85
        $region30: #{tpu_custom_call.1} parent=19 // pred_check_branch
          %177 = sbr.rel (%p175) target = $region32
        $region31: #{tpu_custom_call.1} parent=19 // pred_region
          %p178 = scmp.lt.s32.totalorder %s13, 1
          %s179 = scalar_select %p178, %s13, 1
          %s180 = smul.addr %s179, 2
          %s181 = smul.addr %s180, 4
          %s182 = scalar_lea.vmem %s2, %s181
        $region32: #{tpu_custom_call.1} parent=19 // pred_fallthru
          _
      $region20: #{tpu_custom_call.1} parent=5 // pred_fallthru
        _
      %p183 = scmp.le.s32.totalorder 1, %s13
      %p184 = scmp.lt.s32.totalorder %s13, 3
      %p185 = pnand %p183, %p184
      %p186 = pneg %p185
      // Predicated region
      $region33: #{tpu_custom_call.1} parent=5 // pred_check
        _
      $region34: #{tpu_custom_call.1} parent=5 // pred_check_branch
        %188 = sbr.rel (%p185) target = $region36
      $region35: #{tpu_custom_call.1} parent=5 // pred_region
        %s189 = ssub.s32 %s13, 1
        %p190 = scmp.lt.s32.totalorder %s18, 1
        %s191 = scalar_select %p190, %s18, 1
        %s192 = smul.addr %s191, 2
        %s193 = scalar_lea.vmem %s0, %s192
        %p194 = pneg %p39
        %p195 = pneg %p36
        %p196 = scmp.lt.s32.totalorder %s18, 1
        %s197 = scalar_select %p196, %s18, 1
        %s198 = smul.addr %s197, 2
        %s199 = smul.addr %s198, 4
        %s200 = scalar_lea.vmem %s1, %s199
        %p201 = pneg %p65
        %p202 = pneg %p62
        %p203 = scmp.lt.s32.totalorder %s18, 1
        %s204 = scalar_select %p203, %s18, 1
        %s205 = smul.addr %s204, 2
        %s206 = smul.addr %s205, 4
        %s207 = scalar_lea.vmem %s2, %s206
        %p208 = pneg %p91
        %p209 = pneg %p88
        %p210 = pneg %p112
        %p211 = pneg %p109
        %p212 = pneg %p138
        %p213 = pneg %p135
        %s214 = sand.u32 %s125, 1
        %s215 = scalar_lea.sflag [#allocation3], %s214
        %s216 = sand.u32 %s125, 1
        %s217 = scalar_lea.vmem [#allocation2], %s216
        %p218 = scmp.lt.s32.totalorder %s18, 1
        %s219 = scalar_select %p218, %s18, 1
        %s220 = smul.addr %s219, 2
        %s221 = scalar_lea.vmem %s0, %s220
        %p222 = scmp.lt.s32.totalorder %s18, 1
        %s223 = scalar_select %p222, %s18, 1
        %s224 = smul.addr %s223, 2
        %s225 = smul.addr %s224, 4
        %s226 = scalar_lea.vmem %s1, %s225
        %p227 = scmp.lt.s32.totalorder %s18, 1
        %s228 = scalar_select %p227, %s18, 1
        %s229 = smul.addr %s228, 2
        %s230 = smul.addr %s229, 4
        %s231 = scalar_lea.vmem %s2, %s230
        %v232 = vld [vmem:[%s221] sm:$0x3]
        %v233 = vunpack.c.l.bf16 %v232
        %v234 = vld [vmem:[%s226] sm:$0xff]
        %v235 = vunpack.c.l.bf16 %v234
        %v236 = vunpack.c.h.bf16 %v234
        %v237 = vld [vmem:[%s231] sm:$0xff]
        %v238 = vunpack.c.l.bf16 %v237
        %v239 = vunpack.c.h.bf16 %v237
        %v240 = vld [vmem:[%s3] sm:$0x3]
        %v241 = vunpack.c.l.bf16 %v240
        %v243 = vlaneseq
        %v244 = vshrl.u32 %v243, 7
        %v245 = vsub.s32 0, %v244
        %v246 = vrot.slane %v241, %v245
        %v247 = vlaneseq
        %v248 = vshrl.u32 %v247, 7
        %v249 = vsub.s32 2, %v248
        %v250 = vrot.slane %v241, %v249
        %v253 = vlaneseq
        %v254 = vshrl.u32 %v253, 7
        %v255 = vsub.s32 0, %v254
        %v256 = vrot.slane %v246, %v255
        %v257 = vlaneseq
        %v258 = vshrl.u32 %v257, 7
        %v259 = vsub.s32 0, %v258
        %v260 = vrot.slane %v250, %v259
        %v261 = vsub.f32 %v235, %v256
        %v262 = vsub.f32 %v236, %v260
        %v263 = vmul.f32 %v238, %v261
        %v264 = vmul.f32 %v239, %v262
        %v265 = vadd.f32 %v256, %v263
        %v266 = vadd.f32 %v260, %v264
        %v267 = vmul.f32 %v235, %v238
        %v268 = vmul.f32 %v236, %v239
        %v269 = vlaneseq
        %v270 = vshrl.u32 %v269, 7
        %v271 = vcvt.s32.f32 %v270
        %v272 = vlaneseq
        %v273 = vand.u32 %v272, 127
        %v275 = vlaneseq
        %v276 = vshrl.u32 %v275, 7
        %v277 = vsub.s32 0, %v276
        %v278 = vrot.slane %v233, %v277
        %v279 = vlaneseq
        %v280 = vshrl.u32 %v279, 7
        %v281 = vsub.s32 2, %v280
        %v282 = vrot.slane %v233, %v281
        %v285 = vlaneseq
        %v286 = vshrl.u32 %v285, 7
        %v287 = vsub.s32 0, %v286
        %v288 = vrot.slane %v278, %v287
        %v289 = vlaneseq
        %v290 = vshrl.u32 %v289, 7
        %v291 = vsub.s32 0, %v290
        %v292 = vrot.slane %v282, %v291
        %v293 = vsub.f32 %v288, %v265
        %v294 = vsub.f32 %v292, %v266
        %v295 = vmul.f32 %v293, %v293
        %v296 = vmul.f32 %v294, %v294
        %vm297 = vcmask 1046528
        %v298 = vsel %vm297, %v295, 0.0
        %v299 = vsel %vm297, %v296, 0.0
        %v300 = vadd.f32 %v298, %v299
        %301 = vadd.xlane.f32.xlu0 %v300
        %v302 = vpop.xlane.xlu0 %301
        %v303 = vmul.f32 %v302, 0.00390625
        %v304 = vadd.f32 %v303, 0.0
        %v305 = vsel %vm297, %v304, inf
        %v306 = vrot.slane %v305, 4
        %v307 = vmin.f32 %v305, %v306
        %v308 = vrot.slane %v307, 2
        %v309 = vmin.f32 %v307, %v308
        %v310 = vrot.slane %v309, 1
        %v311 = vmin.f32 %v309, %v310
        %vm312 = vcmp.le.f32.partialorder %v304, %v311
        %v313 = vsel %vm312, %v271, 7.0
        %v314 = vsel %vm297, %v313, inf
        %v315 = vrot.slane %v314, 4
        %v316 = vmin.f32 %v314, %v315
        %v317 = vrot.slane %v316, 2
        %v318 = vmin.f32 %v316, %v317
        %v319 = vrot.slane %v318, 1
        %v320 = vmin.f32 %v318, %v319
        %vm321 = vcmp.eq.f32.partialorder %v271, %v320
        %v322 = vsel %vm321, 1, 0
        %v323 = vcvt.s32.f32 %v322
        %v324 = vmul.f32 %v323, %v267
        %v325 = vmul.f32 %v323, %v268
        %v326 = vsel %vm297, %v324, 0.0
        %v327 = vrot.slane %v326, 4
        %v328 = vadd.f32 %v326, %v327
        %v329 = vrot.slane %v328, 2
        %v330 = vadd.f32 %v328, %v329
        %v331 = vrot.slane %v330, 1
        %v332 = vadd.f32 %v330, %v331
        %v333 = vsel %vm297, %v325, 0.0
        %v334 = vrot.slane %v333, 4
        %v335 = vadd.f32 %v333, %v334
        %v336 = vrot.slane %v335, 2
        %v337 = vadd.f32 %v335, %v336
        %v338 = vrot.slane %v337, 1
        %v339 = vadd.f32 %v337, %v338
        %v340 = vmul.f32 %v323, %v238
        %v341 = vmul.f32 %v323, %v239
        %v342 = vsel %vm297, %v340, 0.0
        %v343 = vrot.slane %v342, 4
        %v344 = vadd.f32 %v342, %v343
        %v345 = vrot.slane %v344, 2
        %v346 = vadd.f32 %v344, %v345
        %v347 = vrot.slane %v346, 1
        %v348 = vadd.f32 %v346, %v347
        %v349 = vsel %vm297, %v341, 0.0
        %v350 = vrot.slane %v349, 4
        %v351 = vadd.f32 %v349, %v350
        %v352 = vrot.slane %v351, 2
        %v353 = vadd.f32 %v351, %v352
        %v354 = vrot.slane %v353, 1
        %v355 = vadd.f32 %v353, %v354
        %v356 = vadd.f32 %v332, 0.0
        %v357 = vadd.f32 %v339, 0.0
        %v358 = vsub.f32 1.0, %v348
        %v359 = vsub.f32 1.0, %v355
        %vm360 = vcmp.gt.f32.partialorder %v320, 0.5
        %v361 = vsel %vm360, 1, 0
        %vm362 = vcmp.eq.s32.totalorder %v361, 1
        %vm363 = vmand %vm321, %vm362
        %v364 = vsel %vm363, 1e+08, 0.0
        %v365 = vadd.f32 %v364, 0.0
        %vm366 = vcmp.eq.s32.totalorder %v273, 0
        %v367 = vsel %vm366, %v320, 0.0
        %v370 = vcombine.low %v356, %v357
        %v372 = vunpack.c.l.s4 1983009808
        %v373 = vunpack.c.0.s8 %v372
        %v374 = vlaneseq
        %v375 = vshrl.u32 %v374, 7
        %v376 = vsub.s32 %v373, %v375
        %v377 = vrot.slane %v370, %v376
        %v379 = vsub.f32 %v233, %v377
        %v380 = vmul.f32 %v358, %v265
        %v381 = vmul.f32 %v359, %v266
        %v383 = vlaneseq
        %v384 = vshrl.u32 %v383, 7
        %v385 = vsub.s32 0, %v384
        %v386 = vrot.slane %v379, %v385
        %v387 = vlaneseq
        %v388 = vshrl.u32 %v387, 7
        %v389 = vsub.s32 2, %v388
        %v390 = vrot.slane %v379, %v389
        %v393 = vlaneseq
        %v394 = vshrl.u32 %v393, 7
        %v395 = vsub.s32 0, %v394
        %v396 = vrot.slane %v386, %v395
        %v397 = vlaneseq
        %v398 = vshrl.u32 %v397, 7
        %v399 = vsub.s32 0, %v398
        %v400 = vrot.slane %v390, %v399
        %v401 = vsub.f32 %v396, %v380
        %v402 = vsub.f32 %v400, %v381
        %v403 = vmul.f32 %v401, %v401
        %v404 = vmul.f32 %v402, %v402
        %v405 = vsel %vm297, %v403, 0.0
        %v406 = vsel %vm297, %v404, 0.0
        %v407 = vadd.f32 %v405, %v406
        %408 = vadd.xlane.f32.xlu0 %v407
        %v409 = vpop.xlane.xlu0 %408
        %v410 = vmul.f32 %v409, 0.00390625
        %v411 = vadd.f32 %v410, %v365
        %v412 = vsel %vm297, %v411, inf
        %v413 = vrot.slane %v412, 4
        %v414 = vmin.f32 %v412, %v413
        %v415 = vrot.slane %v414, 2
        %v416 = vmin.f32 %v414, %v415
        %v417 = vrot.slane %v416, 1
        %v418 = vmin.f32 %v416, %v417
        %vm419 = vcmp.le.f32.partialorder %v411, %v418
        %v420 = vsel %vm419, %v271, 7.0
        %v421 = vsel %vm297, %v420, inf
        %v422 = vrot.slane %v421, 4
        %v423 = vmin.f32 %v421, %v422
        %v424 = vrot.slane %v423, 2
        %v425 = vmin.f32 %v423, %v424
        %v426 = vrot.slane %v425, 1
        %v427 = vmin.f32 %v425, %v426
        %vm428 = vcmp.eq.s32.totalorder %v273, 1
        %v429 = vsel %vm428, %v427, %v367
        %430 = vst [vmem:[%s217] sm:$0x1] %v429
        %s431 = sand.u32 %s125, 1
        %s432 = scalar_lea.sflag [#allocation3], %s431
        %s433 = sand.u32 %s125, 1
        %s434 = scalar_lea.vmem [#allocation2], %s433
        // Predicated region
        $region37: #{tpu_custom_call.1} parent=35 // pred_check
          %p435 = pneg %p135
        $region38: #{tpu_custom_call.1} parent=35 // pred_check_branch
          %437 = sbr.rel (%p435) target = $region40
        $region39: #{tpu_custom_call.1} parent=35 // pred_region
          %s439 = ssub.s32 16, 16
          %440 = vsyncadd %s432, %s439
          %s441 = smul.addr %s18, 16
          %s442 = scalar_lea.hbm %s4, %s441
          %s444 = sshll.u32 %s434, 4
          %s445 = int_to_ptr.vmem [resolvable:$true] %s444
          %447 = dma.vmem_to_hbm [thread:$0]  %s445, 16, %s442, %s432
        $region40: #{tpu_custom_call.1} parent=35 // pred_fallthru
          _
      $region36: #{tpu_custom_call.1} parent=5 // pred_fallthru
        _
      %p448 = scmp.le.s32.totalorder 2, %s13
      // Predicated region
      $region41: #{tpu_custom_call.1} parent=5 // pred_check
        %p449 = pneg %p448
      $region42: #{tpu_custom_call.1} parent=5 // pred_check_branch
        %451 = sbr.rel (%p449) target = $region44
      $region43: #{tpu_custom_call.1} parent=5 // pred_region
        %s452 = ssub.s32 %s13, 2
        // Predicated region
        $region45: #{tpu_custom_call.1} parent=43 // pred_check
          %p453 = pneg %p141
        $region46: #{tpu_custom_call.1} parent=43 // pred_check_branch
          %455 = sbr.rel (%p453) target = $region48
        $region47: #{tpu_custom_call.1} parent=43 // pred_region
          %s456 = sand.u32 %s126, 1
          %s457 = scalar_lea.sflag [#allocation3], %s456
          %s458 = sand.u32 %s126, 1
          %s459 = scalar_lea.vmem [#allocation2], %s458
          %460 = dma.done %s457, 16
        $region48: #{tpu_custom_call.1} parent=43 // pred_fallthru
          _
      $region44: #{tpu_custom_call.1} parent=5 // pred_fallthru
        _
    $region6: #{tpu_custom_call.1} parent=1 // loop_footer
      %s17 = sadd.s32 1, %s13
    $region7: #{tpu_custom_call.1} parent=1 // loop_footer_branch
      %12 = sbr.rel target = $region3
    $region8: #{tpu_custom_call.1} parent=1 // loop_exit
      _
    %461 = vsyncpa [#allocation3], 1
    %s462 = scalar_lea.sflag [#allocation3], 1
    %463 = vsyncpa %s462, 1

</llo_original>
